<compile_context>
chip_gen: v7x
topology: tpu7x:2x2x1
jax: 0.10.0
libtpu: 0.0.40
codegen_flags: <defaults>
</compile_context>

<pallas_src>
import functools

import jax
import jax.numpy as jnp
from jax.experimental import pallas as pl
from jax.experimental.pallas import tpu as pltpu


def _round_up(x, m):
    return (x + m - 1) // m * m


def _cdiv(a, b):
    return -(-a // b)


def _make_kernel(tk_eff, d_in, ragged, w1_resident):
    def kernel(x_ref, w1_ref, b1_ref, w2_ref, b2_ref, o_ref, acc_ref):
        # grid = (batch_tiles, k_steps); K (reduction over d_in) is last.
        k = pl.program_id(1)

        @pl.when(k == 0)
        def _init():
            acc_ref[...] = jnp.zeros_like(acc_ref)

        # x arrives in f32 straight from HBM; cast to bf16 in-registers.
        x_blk = x_ref[...]
        if ragged:
            # Zero the ragged K tail so OOB garbage (possibly NaN) in the
            # partial last tile cannot pollute the reduction.
            col = jax.lax.broadcasted_iota(jnp.int32, x_blk.shape, 1)
            x_blk = jnp.where(k * tk_eff + col < d_in, x_blk,
                              jnp.zeros_like(x_blk))
        x_blk = x_blk.astype(jnp.bfloat16)

        if w1_resident:
            # w_enc is fully resident in VMEM; slice the k-th K chunk.
            start = pl.multiple_of(k * tk_eff, 128)
            w1_blk = w1_ref[pl.ds(start, tk_eff), :]
        else:
            w1_blk = w1_ref[...]

        # Encoder partial matmul: (TM, TK) x (TK, 128), bf16 in, f32 acc.
        acc_ref[...] += jnp.dot(x_blk, w1_blk,
                                preferred_element_type=jnp.float32)

        @pl.when(k == pl.num_programs(1) - 1)
        def _finalize():
            # Epilogue in f32: bias + ReLU, then head matmul (128 -> padded
            # 128) and a lane-dense, full-width store.
            h = jnp.maximum(acc_ref[...] + b1_ref[...], 0.0)
            out = jnp.dot(h.astype(w2_ref.dtype), w2_ref[...],
                          preferred_element_type=jnp.float32)
            o_ref[...] = (out + b2_ref[...]).astype(o_ref.dtype)

    return kernel


def final_model_forward(x_nchw, w_enc, b_enc, w_out, b_out, *, tm=512, tk=2048):
    """x_nchw: (B, C, H, W) float32. Returns (B, num_class) class scores."""
    B = x_nchw.shape[0]
    x_flat = x_nchw.reshape(B, -1)              # glue: flatten NCHW -> (B, D_in)
    d_in = x_flat.shape[1]
    hidden = w_enc.shape[1]                     # 128 (per nn.Linear(128, C))
    num_class = w_out.shape[1]

    # ---- tiling ----------------------------------------------------------
    n_pad = _round_up(num_class, 128)           # lane-dense class dim

    # Batch tile: multiple of 16 (bf16 packing); >=2 tiles when B>=32 so the
    # "parallel" batch axis can be sharded across both v7x TensorCores.
    if B >= 32:
        tm_eff = min(tm, _round_up(_cdiv(B, 2), 16))
    else:
        tm_eff = min(tm, _round_up(B, 16))
    grid_m = _cdiv(B, tm_eff)
    b_pad = grid_m * tm_eff

    # K tile: minimize zero padding instead of rounding d_in up to tk.
    tk_cap = max(128, _round_up(tk, 128))
    k_steps = _cdiv(_round_up(d_in, 128), tk_cap)
    tk_eff = _round_up(_cdiv(d_in, k_steps), 128)
    d_pad = k_steps * tk_eff
    ragged = d_pad != d_in

    # ---- small operand prep (x itself is passed through untouched) --------
    # w_enc: bf16, zero-padded only on the ragged K edge; resident in VMEM
    # across batch tiles when it fits (<= 4 MiB bf16).
    w1_resident = d_pad * hidden * 2 <= (4 << 20)
    if ragged:
        w1 = jnp.zeros((d_pad, hidden), jnp.bfloat16)
        w1 = w1.at[:d_in, :].set(w_enc.astype(jnp.bfloat16))
    else:
        w1 = w_enc.astype(jnp.bfloat16)
    b1 = b_enc.astype(jnp.float32).reshape(1, hidden)
    if num_class != n_pad:
        w2 = jnp.zeros((hidden, n_pad), jnp.bfloat16)
        w2 = w2.at[:, :num_class].set(w_out.astype(jnp.bfloat16))
        b2 = jnp.zeros((1, n_pad), jnp.float32)
        b2 = b2.at[0, :num_class].set(b_out.astype(jnp.float32))
    else:
        w2 = w_out.astype(jnp.bfloat16)
        b2 = b_out.astype(jnp.float32).reshape(1, n_pad)

    grid = (grid_m, k_steps)

    if w1_resident:
        w1_spec = pl.BlockSpec((d_pad, hidden), lambda i, k: (0, 0))
    else:
        w1_spec = pl.BlockSpec((tk_eff, hidden), lambda i, k: (k, 0))

    # ---- VMEM budget (safe for v7x's 64 MiB; v5e/v6e have headroom) --------
    x_vmem = 2 * tm_eff * tk_eff * 4                       # f32 x tile, 2 bufs
    w1_vmem = (2 * d_pad * hidden * 2) if w1_resident else (2 * tk_eff * hidden * 2)
    vmem_need = (x_vmem + w1_vmem
                 + tm_eff * hidden * 4                     # f32 accumulator
                 + 2 * tm_eff * n_pad * 4                  # output tile, 2 bufs
                 + 2 * hidden * n_pad * 2                  # w2
                 + (2 << 20))                              # biases + temps
    vmem_limit = min(48 << 20, max(32 << 20, (vmem_need * 3) // 2))

    cost = pl.CostEstimate(
        flops=2 * b_pad * d_pad * hidden + 2 * b_pad * hidden * n_pad,
        transcendentals=0,
        bytes_accessed=(x_flat.size * 4
                        + w1.size * 2 * (1 if w1_resident else grid_m)
                        + w2.size * 2 + b1.size * 4 + b2.size * 4
                        + b_pad * n_pad * 4),
    )

    out = pl.pallas_call(
        _make_kernel(tk_eff, d_in, ragged, w1_resident),
        out_shape=jax.ShapeDtypeStruct((b_pad, n_pad), jnp.float32),
        grid_spec=pltpu.PrefetchScalarGridSpec(
            num_scalar_prefetch=0,
            grid=grid,
            in_specs=[
                pl.BlockSpec((tm_eff, tk_eff), lambda i, k: (i, k)),  # x tile (f32)
                w1_spec,                                              # w_enc
                pl.BlockSpec((1, hidden), lambda i, k: (0, 0)),       # b_enc (resident)
                pl.BlockSpec((hidden, n_pad), lambda i, k: (0, 0)),   # w_out (resident)
                pl.BlockSpec((1, n_pad), lambda i, k: (0, 0)),        # b_out (resident)
            ],
            out_specs=pl.BlockSpec((tm_eff, n_pad), lambda i, k: (i, 0)),
            scratch_shapes=[pltpu.VMEM((tm_eff, hidden), jnp.float32)],
        ),
        compiler_params=pltpu.CompilerParams(
            dimension_semantics=("parallel", "arbitrary"),  # batch || across TCs
            vmem_limit_bytes=int(vmem_limit),
        ),
        cost_estimate=cost,
    )(x_flat, w1, b1, w2, b2)

    return out[:B, :num_class]


if __name__ == "__main__":
    HIDDEN = 128           # encoder feature dim / nn.Linear(128, num_class) input

    def _reference(x, w_enc, b_enc, w_out, b_out):
        # Pure-JAX reference with matching bf16-input / f32-accumulate semantics.
        xf = x.reshape(x.shape[0], -1)
        h = jnp.maximum(
            jnp.dot(xf.astype(jnp.bfloat16), w_enc.astype(jnp.bfloat16),
                    preferred_element_type=jnp.float32) + b_enc, 0.0)
        return jnp.dot(h.astype(jnp.bfloat16), w_out.astype(jnp.bfloat16),
                       preferred_element_type=jnp.float32) + b_out

    def _run_case(B, C, H, W, num_class, **kw):
        kx, kw1, kb1, kw2, kb2 = jax.random.split(jax.random.PRNGKey(0), 5)
        d_in = C * H * W
        x = jax.random.normal(kx, (B, C, H, W), dtype=jnp.float32)
        w_enc = jax.random.normal(kw1, (d_in, HIDDEN), dtype=jnp.float32) * 0.02
        b_enc = jax.random.normal(kb1, (HIDDEN,), dtype=jnp.float32) * 0.02
        w_out = jax.random.normal(kw2, (HIDDEN, num_class), dtype=jnp.float32) * 0.02
        b_out = jax.random.normal(kb2, (num_class,), dtype=jnp.float32) * 0.02

        scores = final_model_forward(x, w_enc, b_enc, w_out, b_out, **kw)
        jax.block_until_ready(scores)

        ref = _reference(x, w_enc, b_enc, w_out, b_out)
        assert scores.shape == (B, num_class)
        assert jnp.allclose(scores, ref, atol=2e-3, rtol=2e-2), (
            float(jnp.max(jnp.abs(scores - ref))))

    # Case 1: standard image input, d_in = 3*16*16 = 768 (multiple of 128):
    # no padding or masking anywhere, single K step.
    _run_case(B=2, C=3, H=16, W=16, num_class=10)

    # Case 2: ragged d_in (3*15*15 = 675) with multiple K steps (tk=256):
    # exercises the in-kernel K-tail masking and the resident-w_enc
    # dynamic-slice path.
    _run_case(B=4, C=3, H=15, W=15, num_class=10, tk=256)

    print("KERNEL_OK")
</pallas_src>

<mosaic_0001>
module attributes {stable_mosaic.version = 11 : i64} {
  func.func @kernel(%arg0: i32, %arg1: i32, %arg2: memref<16x768xf32, #tpu.memory_space<vmem>>, %arg3: memref<768x128xbf16, #tpu.memory_space<vmem>>, %arg4: memref<1x128xf32, #tpu.memory_space<vmem>>, %arg5: memref<128x128xbf16, #tpu.memory_space<vmem>>, %arg6: memref<1x128xf32, #tpu.memory_space<vmem>>, %arg7: memref<16x128xf32, #tpu.memory_space<vmem>>, %arg8: memref<16x128xf32, #tpu.memory_space<vmem>>) attributes {dimension_semantics = [#tpu.dimension_semantics<parallel>, #tpu.dimension_semantics<arbitrary>], iteration_bounds = array<i64: 1, 1>, scalar_prefetch = 0 : i64, scratch_operands = 1 : i64, tpu.core_type = #tpu.core_type<tc>, window_params = [{transform_indices = @transform_0, window_bounds = array<i64: 16, 768>}, {pipeline_mode = #tpu.pipeline_mode<synchronous>, transform_indices = @transform_1, window_bounds = array<i64: 768, 128>}, {pipeline_mode = #tpu.pipeline_mode<synchronous>, transform_indices = @transform_2, window_bounds = array<i64: 1, 128>}, {pipeline_mode = #tpu.pipeline_mode<synchronous>, transform_indices = @transform_3, window_bounds = array<i64: 128, 128>}, {pipeline_mode = #tpu.pipeline_mode<synchronous>, transform_indices = @transform_4, window_bounds = array<i64: 1, 128>}, {transform_indices = @transform_5, window_bounds = array<i64: 16, 128>}]} {
    %c0_i32 = arith.constant 0 : i32
    %0 = arith.cmpi eq, %arg1, %c0_i32 : i32
    %1 = arith.extui %0 : i1 to i32
    %c0_i32_0 = arith.constant 0 : i32
    %2 = arith.cmpi ne, %1, %c0_i32_0 : i32
    scf.if %2 {
      %cst_9 = arith.constant 0.000000e+00 : f32
      %16 = vector.broadcast %cst_9 : f32 to vector<16x128xf32>
      %c0_10 = arith.constant 0 : index
      %c0_11 = arith.constant 0 : index
      %17 = vector.load %arg8[%c0_10, %c0_11] : memref<16x128xf32, #tpu.memory_space<vmem>>, vector<16x128xf32>
      tpu.vector_store %arg8[%c0_10, %c0_11], %16 {strides = array<i32>} : memref<16x128xf32, #tpu.memory_space<vmem>>, vector<16x128xf32>,
    } else {
    }
    %c0 = arith.constant 0 : index
    %c0_1 = arith.constant 0 : index
    %3 = vector.load %arg2[%c0, %c0_1] : memref<16x768xf32, #tpu.memory_space<vmem>>, vector<16x768xf32>
    %4 = arith.truncf %3 : vector<16x768xf32> to vector<16x768xbf16>
    %c768_i32 = arith.constant 768 : i32
    %5 = arith.muli %arg1, %c768_i32 : i32
    %6 = tpu.assume_multiple %5, 128 : i32
    %7 = arith.index_cast %6 : i32 to index
    %c0_2 = arith.constant 0 : index
    %8 = vector.load %arg3[%7, %c0_2] : memref<768x128xbf16, #tpu.memory_space<vmem>>, vector<768x128xbf16>
    %c0_3 = arith.constant 0 : index
    %c0_4 = arith.constant 0 : index
    %9 = vector.load %arg8[%c0_3, %c0_4] : memref<16x128xf32, #tpu.memory_space<vmem>>, vector<16x128xf32>
    %cst = arith.constant dense<0.000000e+00> : vector<16x128xf32>
    %10 = tpu.matmul %4, %8, %cst {dimension_numbers = #tpu.dot_dimension_numbers<[1], [0], [0], [1], [0, 0, 1, 1], [], []>} : vector<16x768xbf16>, vector<768x128xbf16>, vector<16x128xf32> -> vector<16x128xf32>
    %11 = arith.addf %9, %10 : vector<16x128xf32>
    %c0_5 = arith.constant 0 : index
    %c0_6 = arith.constant 0 : index
    %12 = vector.load %arg8[%c0_5, %c0_6] : memref<16x128xf32, #tpu.memory_space<vmem>>, vector<16x128xf32>
    tpu.vector_store %arg8[%c0_5, %c0_6], %11 {strides = array<i32>} : memref<16x128xf32, #tpu.memory_space<vmem>>, vector<16x128xf32>,
    %c0_i32_7 = arith.constant 0 : i32
    %13 = arith.cmpi eq, %arg1, %c0_i32_7 : i32
    %14 = arith.extui %13 : i1 to i32
    %c0_i32_8 = arith.constant 0 : i32
    %15 = arith.cmpi ne, %14, %c0_i32_8 : i32
    scf.if %15 {
      %c0_9 = arith.constant 0 : index
      %c0_10 = arith.constant 0 : index
      %16 = vector.load %arg8[%c0_9, %c0_10] : memref<16x128xf32, #tpu.memory_space<vmem>>, vector<16x128xf32>
      %c0_11 = arith.constant 0 : index
      %c0_12 = arith.constant 0 : index
      %17 = vector.load %arg4[%c0_11, %c0_12] : memref<1x128xf32, #tpu.memory_space<vmem>>, vector<1x128xf32>
      %18 = vector.broadcast %17 : vector<1x128xf32> to vector<16x128xf32>
      %19 = arith.addf %16, %18 : vector<16x128xf32>
      %cst_13 = arith.constant 0.000000e+00 : f32
      %20 = vector.broadcast %cst_13 : f32 to vector<16x128xf32>
      %21 = arith.maximumf %19, %20 : vector<16x128xf32>
      %22 = arith.truncf %21 : vector<16x128xf32> to vector<16x128xbf16>
      %c0_14 = arith.constant 0 : index
      %c0_15 = arith.constant 0 : index
      %23 = vector.load %arg5[%c0_14, %c0_15] : memref<128x128xbf16, #tpu.memory_space<vmem>>, vector<128x128xbf16>
      %cst_16 = arith.constant dense<0.000000e+00> : vector<16x128xf32>
      %24 = tpu.matmul %22, %23, %cst_16 {dimension_numbers = #tpu.dot_dimension_numbers<[1], [0], [0], [1], [0, 0, 1, 1], [], []>} : vector<16x128xbf16>, vector<128x128xbf16>, vector<16x128xf32> -> vector<16x128xf32>
      %c0_17 = arith.constant 0 : index
      %c0_18 = arith.constant 0 : index
      %25 = vector.load %arg6[%c0_17, %c0_18] : memref<1x128xf32, #tpu.memory_space<vmem>>, vector<1x128xf32>
      %26 = vector.broadcast %25 : vector<1x128xf32> to vector<16x128xf32>
      %27 = arith.addf %24, %26 : vector<16x128xf32>
      %c0_19 = arith.constant 0 : index
      %c0_20 = arith.constant 0 : index
      %28 = vector.load %arg7[%c0_19, %c0_20] : memref<16x128xf32, #tpu.memory_space<vmem>>, vector<16x128xf32>
      tpu.vector_store %arg7[%c0_19, %c0_20], %27 {strides = array<i32>} : memref<16x128xf32, #tpu.memory_space<vmem>>, vector<16x128xf32>,
    } else {
    }
    return
  }
  func.func @transform_0(%arg0: i32, %arg1: i32) -> (i32, i32) {
    %c0_i32 = arith.constant 0 : i32
    return %arg0, %arg1 : i32, i32
  }
  func.func @transform_1(%arg0: i32, %arg1: i32) -> (i32, i32) {
    %c0_i32 = arith.constant 0 : i32
    %c0_i32_0 = arith.constant 0 : i32
    %c0_i32_1 = arith.constant 0 : i32
    return %c0_i32, %c0_i32_0 : i32, i32
  }
  func.func @transform_2(%arg0: i32, %arg1: i32) -> (i32, i32) {
    %c0_i32 = arith.constant 0 : i32
    %c0_i32_0 = arith.constant 0 : i32
    %c0_i32_1 = arith.constant 0 : i32
    return %c0_i32, %c0_i32_0 : i32, i32
  }
  func.func @transform_3(%arg0: i32, %arg1: i32) -> (i32, i32) {
    %c0_i32 = arith.constant 0 : i32
    %c0_i32_0 = arith.constant 0 : i32
    %c0_i32_1 = arith.constant 0 : i32
    return %c0_i32, %c0_i32_0 : i32, i32
  }
  func.func @transform_4(%arg0: i32, %arg1: i32) -> (i32, i32) {
    %c0_i32 = arith.constant 0 : i32
    %c0_i32_0 = arith.constant 0 : i32
    %c0_i32_1 = arith.constant 0 : i32
    return %c0_i32, %c0_i32_0 : i32, i32
  }
  func.func @transform_5(%arg0: i32, %arg1: i32) -> (i32, i32) {
    %c0_i32 = arith.constant 0 : i32
    %c0_i32_0 = arith.constant 0 : i32
    return %arg0, %c0_i32 : i32, i32
  }
}

</mosaic_0001>

<llo_original>
// kernel: tpu_custom_call.1
$region0: #{tpu_custom_call.1}
  #allocation0 [shape = 'u32[]', space=smem, size = 0x4, offset = 0x4, fixed_abs, tag = 'smem constant byte address 0x4 - core index']
  #allocation1 [shape = 'u32[144,128]{1,0:T(1,128)}', space=vmem, size = 0x12000, scoped, tag = 'internal scratch']
  #allocation2 [shape = 'f32[16,128]{1,0:T(8,128)}', space=vmem, size = 0x2000, scoped, tag = 'scratch operand']
  %s0 = inlined_call_operand.hbm [shape: f32[2,768], index: 0, kind: input, shape index: {}]
  %s1 = inlined_call_operand.hbm [shape: bf16[768,128], index: 1, kind: input, shape index: {}]
  %s2 = inlined_call_operand.vmem [shape: f32[1,128], index: 2, kind: input, shape index: {}]
  %s3 = inlined_call_operand.hbm [shape: bf16[128,128], index: 3, kind: input, shape index: {}]
  %s4 = inlined_call_operand.vmem [shape: f32[1,128], index: 4, kind: input, shape index: {}]
  %s5 = inlined_call_operand.hbm [shape: f32[16,128], index: 5, kind: output, shape index: {}]
  %s6 = sld [smem:[#allocation0]]
  $region50: #{tpu_custom_call.1} parent=0
    _
  %s8 = ssub.s32 1, %s6
  %s9 = scalar_select 0, %s8, %s6
  $region1: #{tpu_custom_call.1} parent=0
    #allocation3 [shape = 'u8[49152]{0}', space=vmem, size = 0xc000, scoped, tag = 'input window, operand 0, single buffered']
    #allocation4 [shape = 's32[1]{0}', space=sflag, size = 0x4, scoped, tag = 'scoped memory for tpu_custom_call.1']
    #allocation5 [shape = 's32[1]{0}', space=sflag, size = 0x4, scoped, tag = 'scoped memory for tpu_custom_call.1']
    #allocation6 [shape = 'u8[196608]{0}', space=vmem, size = 0x30000, scoped, tag = 'input window, operand 1, single buffered']
    #allocation7 [shape = 's32[1]{0}', space=sflag, size = 0x4, scoped, tag = 'scoped memory for tpu_custom_call.1']
    #allocation8 [shape = 'u8[32768]{0}', space=vmem, size = 0x8000, scoped, tag = 'input window, operand 3, single buffered']
    #allocation9 [shape = 'u8[8192]{0}', space=vmem, size = 0x2000, scoped, tag = 'output window, operand 0, single buffered']
    %10 = vsyncpa [#allocation4], 0
    %11 = vsyncpa [#allocation7], 0
    %12 = vsyncpa [#allocation5], 0
    // Predicated region
    $region2: #{tpu_custom_call.1} parent=1 // pred_check
      _
    $region3: #{tpu_custom_call.1} parent=1 // pred_check_branch
      %14 = sbr.rel (0) target = $region5
    $region4: #{tpu_custom_call.1} parent=1 // pred_region
      %s16 = ssub.s32 1536, 192
      %17 = vsyncadd [#allocation4], %s16
      %s18 = sshll.u32 [#allocation3], 4
      %s19 = int_to_ptr.vmem [resolvable:$true] %s18
      %24 = dma.hbm_to_vmem [thread:$0]  %s0, 192, %s19, [#allocation4], 192, 192, 12
    $region5: #{tpu_custom_call.1} parent=1 // pred_fallthru
      _
    // Predicated region
    $region6: #{tpu_custom_call.1} parent=1 // pred_check
      _
    $region7: #{tpu_custom_call.1} parent=1 // pred_check_branch
      %26 = sbr.rel (0) target = $region9
    $region8: #{tpu_custom_call.1} parent=1 // pred_region
      %s28 = ssub.s32 6144, 6144
      %29 = vsyncadd [#allocation7], %s28
      %s30 = sshll.u32 [#allocation6], 4
      %s31 = int_to_ptr.vmem [resolvable:$true] %s30
      %36 = dma.hbm_to_vmem [thread:$0]  %s1, 6144, %s31, [#allocation7], 64, 64, 4
    $region9: #{tpu_custom_call.1} parent=1 // pred_fallthru
      _
    // Predicated region
    $region10: #{tpu_custom_call.1} parent=1 // pred_check
      _
    $region11: #{tpu_custom_call.1} parent=1 // pred_check_branch
      %38 = sbr.rel (0) target = $region13
    $region12: #{tpu_custom_call.1} parent=1 // pred_region
      _
    $region13: #{tpu_custom_call.1} parent=1 // pred_fallthru
      _
    // Predicated region
    $region14: #{tpu_custom_call.1} parent=1 // pred_check
      _
    $region15: #{tpu_custom_call.1} parent=1 // pred_check_branch
      %40 = sbr.rel (0) target = $region17
    $region16: #{tpu_custom_call.1} parent=1 // pred_region
      %s42 = ssub.s32 1024, 1024
      %43 = vsyncadd [#allocation7], %s42
      %s44 = sshll.u32 [#allocation8], 4
      %s45 = int_to_ptr.vmem [resolvable:$true] %s44
      %50 = dma.hbm_to_vmem [thread:$0]  %s3, 1024, %s45, [#allocation7], 64, 64, 4
    $region17: #{tpu_custom_call.1} parent=1 // pred_fallthru
      _
    // Predicated region
    $region18: #{tpu_custom_call.1} parent=1 // pred_check
      _
    $region19: #{tpu_custom_call.1} parent=1 // pred_check_branch
      %52 = sbr.rel (0) target = $region21
    $region20: #{tpu_custom_call.1} parent=1 // pred_region
      _
    $region21: #{tpu_custom_call.1} parent=1 // pred_fallthru
      _
    // Predicated region
    $region22: #{tpu_custom_call.1} parent=1 // pred_check
      _
    $region23: #{tpu_custom_call.1} parent=1 // pred_check_branch
      %54 = sbr.rel (0) target = $region25
    $region24: #{tpu_custom_call.1} parent=1 // pred_region
      %55 = dma.done [#allocation4], 1536
    $region25: #{tpu_custom_call.1} parent=1 // pred_fallthru
      _
    // Predicated region
    $region26: #{tpu_custom_call.1} parent=1 // pred_check
      _
    $region27: #{tpu_custom_call.1} parent=1 // pred_check_branch
      %57 = sbr.rel (0) target = $region29
    $region28: #{tpu_custom_call.1} parent=1 // pred_region
      %58 = dma.done [#allocation7], 6144
    $region29: #{tpu_custom_call.1} parent=1 // pred_fallthru
      _
    // Predicated region
    $region30: #{tpu_custom_call.1} parent=1 // pred_check
      _
    $region31: #{tpu_custom_call.1} parent=1 // pred_check_branch
      %60 = sbr.rel (0) target = $region33
    $region32: #{tpu_custom_call.1} parent=1 // pred_region
      %61 = dma.done [#allocation7], 1024
    $region33: #{tpu_custom_call.1} parent=1 // pred_fallthru
      _
    %p63 = scmp.eq.s32.totalorder 0, 0
    // Predicated region
    $region34: #{tpu_custom_call.1} parent=1 // pred_check
      %p64 = pneg %p63
    $region35: #{tpu_custom_call.1} parent=1 // pred_check_branch
      %66 = sbr.rel (%p64) target = $region37
    $region36: #{tpu_custom_call.1} parent=1 // pred_region
      %67 = vst [vmem:[#allocation2] sm:$0xff] 0.0
      %68 = vst [vmem:[#allocation2 + $0x8] sm:$0xff] 0.0
    $region37: #{tpu_custom_call.1} parent=1 // pred_fallthru
      _
    %v69 = vld [vmem:[#allocation3] sm:$0xff]
    %v70 = vld [vmem:[#allocation3 + $0x8] sm:$0xf]
    %v71 = vld [vmem:[#allocation3 + $0xc] sm:$0xff]
    %v72 = vld [vmem:[#allocation3 + $0x14] sm:$0xf]
    %v73 = vld [vmem:[#allocation3 + $0x18] sm:$0xff]
    %v74 = vld [vmem:[#allocation3 + $0x20] sm:$0xf]
    %v75 = vld [vmem:[#allocation3 + $0x24] sm:$0xff]
    %v76 = vld [vmem:[#allocation3 + $0x2c] sm:$0xf]
    %v77 = vld [vmem:[#allocation3 + $0x30] sm:$0xff]
    %v78 = vld [vmem:[#allocation3 + $0x38] sm:$0xf]
    %v79 = vld [vmem:[#allocation3 + $0x3c] sm:$0xff]
    %v80 = vld [vmem:[#allocation3 + $0x44] sm:$0xf]
    %v81 = vld [vmem:[#allocation3 + $0x48] sm:$0xff]
    %v82 = vld [vmem:[#allocation3 + $0x50] sm:$0xf]
    %v83 = vld [vmem:[#allocation3 + $0x54] sm:$0xff]
    %v84 = vld [vmem:[#allocation3 + $0x5c] sm:$0xf]
    %v101 = vcombine.low %v69, %v71
    %v102 = vcombine.high %v69, %v71
    %v103 = vcombine.low %v73, %v75
    %v104 = vcombine.high %v73, %v75
    %v106 = vunpack.c.l.s4 1983009808
    %v107 = vunpack.c.0.s8 %v106
    %v108 = vlaneseq
    %v109 = vshrl.u32 %v108, 7
    %v110 = vsub.s32 %v107, %v109
    %v111 = vrot.slane %v101, %v110
    %v113 = vunpack.c.l.s4 1983009808
    %v114 = vunpack.c.0.s8 %v113
    %v115 = vlaneseq
    %v116 = vshrl.u32 %v115, 7
    %v117 = vsub.s32 %v114, %v116
    %v118 = vrot.slane %v102, %v117
    %v120 = vunpack.c.l.s4 1983009808
    %v121 = vunpack.c.0.s8 %v120
    %v122 = vlaneseq
    %v123 = vshrl.u32 %v122, 7
    %v124 = vsub.s32 %v121, %v123
    %v125 = vrot.slane %v103, %v124
    %v127 = vunpack.c.l.s4 1983009808
    %v128 = vunpack.c.0.s8 %v127
    %v129 = vlaneseq
    %v130 = vshrl.u32 %v129, 7
    %v131 = vsub.s32 %v128, %v130
    %v132 = vrot.slane %v104, %v131
    %v133 = vcombine.low %v111, %v125
    %v134 = vcombine.high %v111, %v125
    %v135 = vcombine.low %v118, %v132
    %v136 = vcombine.high %v118, %v132
    %v137 = vcombine.low %v70, %v72
    %v138 = vcombine.low %v74, %v76
    %v140 = vunpack.c.l.s4 1983009808
    %v141 = vunpack.c.0.s8 %v140
    %v142 = vlaneseq
    %v143 = vshrl.u32 %v142, 7
    %v144 = vsub.s32 %v141, %v143
    %v145 = vrot.slane %v137, %v144
    %v147 = vunpack.c.l.s4 1983009808
    %v148 = vunpack.c.0.s8 %v147
    %v149 = vlaneseq
    %v150 = vshrl.u32 %v149, 7
    %v151 = vsub.s32 %v148, %v150
    %v152 = vrot.slane %v138, %v151
    %v153 = vcombine.low %v145, %v152
    %v154 = vcombine.high %v145, %v152
    %v155 = vcombine.low %v77, %v79
    %v156 = vcombine.high %v77, %v79
    %v157 = vcombine.low %v81, %v83
    %v158 = vcombine.high %v81, %v83
    %v160 = vunpack.c.l.s4 1983009808
    %v161 = vunpack.c.0.s8 %v160
    %v162 = vlaneseq
    %v163 = vshrl.u32 %v162, 7
    %v164 = vsub.s32 %v161, %v163
    %v165 = vrot.slane %v155, %v164
    %v167 = vunpack.c.l.s4 1983009808
    %v168 = vunpack.c.0.s8 %v167
    %v169 = vlaneseq
    %v170 = vshrl.u32 %v169, 7
    %v171 = vsub.s32 %v168, %v170
    %v172 = vrot.slane %v156, %v171
    %v174 = vunpack.c.l.s4 1983009808
    %v175 = vunpack.c.0.s8 %v174
    %v176 = vlaneseq
    %v177 = vshrl.u32 %v176, 7
    %v178 = vsub.s32 %v175, %v177
    %v179 = vrot.slane %v157, %v178
    %v181 = vunpack.c.l.s4 1983009808
    %v182 = vunpack.c.0.s8 %v181
    %v183 = vlaneseq
    %v184 = vshrl.u32 %v183, 7
    %v185 = vsub.s32 %v182, %v184
    %v186 = vrot.slane %v158, %v185
    %v187 = vcombine.low %v165, %v179
    %v188 = vcombine.high %v165, %v179
    %v189 = vcombine.low %v172, %v186
    %v190 = vcombine.high %v172, %v186
    %v191 = vcombine.low %v78, %v80
    %v192 = vcombine.low %v82, %v84
    %v194 = vunpack.c.l.s4 1983009808
    %v195 = vunpack.c.0.s8 %v194
    %v196 = vlaneseq
    %v197 = vshrl.u32 %v196, 7
    %v198 = vsub.s32 %v195, %v197
    %v199 = vrot.slane %v191, %v198
    %v201 = vunpack.c.l.s4 1983009808
    %v202 = vunpack.c.0.s8 %v201
    %v203 = vlaneseq
    %v204 = vshrl.u32 %v203, 7
    %v205 = vsub.s32 %v202, %v204
    %v206 = vrot.slane %v192, %v205
    %v207 = vcombine.low %v199, %v206
    %v208 = vcombine.high %v199, %v206
    %v221 = vpack.c.bf16 %v187, %v133
    %v222 = vpack.c.bf16 %v188, %v134
    %v223 = vpack.c.bf16 %v189, %v135
    %v224 = vpack.c.bf16 %v190, %v136
    %v225 = vpack.c.bf16 %v207, %v153
    %v226 = vpack.c.bf16 %v208, %v154
    %s227 = smul.u32 0, 768
    %s228 = sshra.s32 %s227, 3
    %s229 = sand.u32 %s227, 7
    %s230 = smul.addr %s228, 4
    %s231 = scalar_lea.vmem [#allocation6], %s230
    %v232 = vld [vmem:[%s231] sm:$0xf]
    %v233 = vld [vmem:[%s231 + $0x4] sm:$0xf]
    %v234 = vld [vmem:[%s231 + $0x8] sm:$0xf]
    %v235 = vld [vmem:[%s231 + $0xc] sm:$0xf]
    %v236 = vld [vmem:[%s231 + $0x10] sm:$0xf]
    %v237 = vld [vmem:[%s231 + $0x14] sm:$0xf]
    %v238 = vld [vmem:[%s231 + $0x18] sm:$0xf]
    %v239 = vld [vmem:[%s231 + $0x1c] sm:$0xf]
    %v240 = vld [vmem:[%s231 + $0x20] sm:$0xf]
    %v241 = vld [vmem:[%s231 + $0x24] sm:$0xf]
    %v242 = vld [vmem:[%s231 + $0x28] sm:$0xf]
    %v243 = vld [vmem:[%s231 + $0x2c] sm:$0xf]
    %v244 = vld [vmem:[%s231 + $0x30] sm:$0xf]
    %v245 = vld [vmem:[%s231 + $0x34] sm:$0xf]
    %v246 = vld [vmem:[%s231 + $0x38] sm:$0xf]
    %v247 = vld [vmem:[%s231 + $0x3c] sm:$0xf]
    %v248 = vld [vmem:[%s231 + $0x40] sm:$0xf]
    %v249 = vld [vmem:[%s231 + $0x44] sm:$0xf]
    %v250 = vld [vmem:[%s231 + $0x48] sm:$0xf]
    %v251 = vld [vmem:[%s231 + $0x4c] sm:$0xf]
    %v252 = vld [vmem:[%s231 + $0x50] sm:$0xf]
    %v253 = vld [vmem:[%s231 + $0x54] sm:$0xf]
    %v254 = vld [vmem:[%s231 + $0x58] sm:$0xf]
    %v255 = vld [vmem:[%s231 + $0x5c] sm:$0xf]
    %v256 = vld [vmem:[%s231 + $0x60] sm:$0xf]
    %v257 = vld [vmem:[%s231 + $0x64] sm:$0xf]
    %v258 = vld [vmem:[%s231 + $0x68] sm:$0xf]
    %v259 = vld [vmem:[%s231 + $0x6c] sm:$0xf]
    %v260 = vld [vmem:[%s231 + $0x70] sm:$0xf]
    %v261 = vld [vmem:[%s231 + $0x74] sm:$0xf]
    %v262 = vld [vmem:[%s231 + $0x78] sm:$0xf]
    %v263 = vld [vmem:[%s231 + $0x7c] sm:$0xf]
    %v264 = vld [vmem:[%s231 + $0x80] sm:$0xf]
    %v265 = vld [vmem:[%s231 + $0x84] sm:$0xf]
    %v266 = vld [vmem:[%s231 + $0x88] sm:$0xf]
    %v267 = vld [vmem:[%s231 + $0x8c] sm:$0xf]
    %v268 = vld [vmem:[%s231 + $0x90] sm:$0xf]
    %v269 = vld [vmem:[%s231 + $0x94] sm:$0xf]
    %v270 = vld [vmem:[%s231 + $0x98] sm:$0xf]
    %v271 = vld [vmem:[%s231 + $0x9c] sm:$0xf]
    %v272 = vld [vmem:[%s231 + $0xa0] sm:$0xf]
    %v273 = vld [vmem:[%s231 + $0xa4] sm:$0xf]
    %v274 = vld [vmem:[%s231 + $0xa8] sm:$0xf]
    %v275 = vld [vmem:[%s231 + $0xac] sm:$0xf]
    %v276 = vld [vmem:[%s231 + $0xb0] sm:$0xf]
    %v277 = vld [vmem:[%s231 + $0xb4] sm:$0xf]
    %v278 = vld [vmem:[%s231 + $0xb8] sm:$0xf]
    %v279 = vld [vmem:[%s231 + $0xbc] sm:$0xf]
    %v280 = vld [vmem:[%s231 + $0xc0] sm:$0xf]
    %v281 = vld [vmem:[%s231 + $0xc4] sm:$0xf]
    %v282 = vld [vmem:[%s231 + $0xc8] sm:$0xf]
    %v283 = vld [vmem:[%s231 + $0xcc] sm:$0xf]
    %v284 = vld [vmem:[%s231 + $0xd0] sm:$0xf]
    %v285 = vld [vmem:[%s231 + $0xd4] sm:$0xf]
    %v286 = vld [vmem:[%s231 + $0xd8] sm:$0xf]
    %v287 = vld [vmem:[%s231 + $0xdc] sm:$0xf]
    %v288 = vld [vmem:[%s231 + $0xe0] sm:$0xf]
    %v289 = vld [vmem:[%s231 + $0xe4] sm:$0xf]
    %v290 = vld [vmem:[%s231 + $0xe8] sm:$0xf]
    %v291 = vld [vmem:[%s231 + $0xec] sm:$0xf]
    %v292 = vld [vmem:[%s231 + $0xf0] sm:$0xf]
    %v293 = vld [vmem:[%s231 + $0xf4] sm:$0xf]
    %v294 = vld [vmem:[%s231 + $0xf8] sm:$0xf]
    %v295 = vld [vmem:[%s231 + $0xfc] sm:$0xf]
    %v296 = vld [vmem:[%s231 + $0x100] sm:$0xf]
    %v297 = vld [vmem:[%s231 + $0x104] sm:$0xf]
    %v298 = vld [vmem:[%s231 + $0x108] sm:$0xf]
    %v299 = vld [vmem:[%s231 + $0x10c] sm:$0xf]
    %v300 = vld [vmem:[%s231 + $0x110] sm:$0xf]
    %v301 = vld [vmem:[%s231 + $0x114] sm:$0xf]
    %v302 = vld [vmem:[%s231 + $0x118] sm:$0xf]
    %v303 = vld [vmem:[%s231 + $0x11c] sm:$0xf]
    %v304 = vld [vmem:[%s231 + $0x120] sm:$0xf]
    %v305 = vld [vmem:[%s231 + $0x124] sm:$0xf]
    %v306 = vld [vmem:[%s231 + $0x128] sm:$0xf]
    %v307 = vld [vmem:[%s231 + $0x12c] sm:$0xf]
    %v308 = vld [vmem:[%s231 + $0x130] sm:$0xf]
    %v309 = vld [vmem:[%s231 + $0x134] sm:$0xf]
    %v310 = vld [vmem:[%s231 + $0x138] sm:$0xf]
    %v311 = vld [vmem:[%s231 + $0x13c] sm:$0xf]
    %v312 = vld [vmem:[%s231 + $0x140] sm:$0xf]
    %v313 = vld [vmem:[%s231 + $0x144] sm:$0xf]
    %v314 = vld [vmem:[%s231 + $0x148] sm:$0xf]
    %v315 = vld [vmem:[%s231 + $0x14c] sm:$0xf]
    %v316 = vld [vmem:[%s231 + $0x150] sm:$0xf]
    %v317 = vld [vmem:[%s231 + $0x154] sm:$0xf]
    %v318 = vld [vmem:[%s231 + $0x158] sm:$0xf]
    %v319 = vld [vmem:[%s231 + $0x15c] sm:$0xf]
    %v320 = vld [vmem:[%s231 + $0x160] sm:$0xf]
    %v321 = vld [vmem:[%s231 + $0x164] sm:$0xf]
    %v322 = vld [vmem:[%s231 + $0x168] sm:$0xf]
    %v323 = vld [vmem:[%s231 + $0x16c] sm:$0xf]
    %v324 = vld [vmem:[%s231 + $0x170] sm:$0xf]
    %v325 = vld [vmem:[%s231 + $0x174] sm:$0xf]
    %v326 = vld [vmem:[%s231 + $0x178] sm:$0xf]
    %v327 = vld [vmem:[%s231 + $0x17c] sm:$0xf]
    %v328 = vld [vmem:[#allocation2] sm:$0xff]
    %v329 = vld [vmem:[#allocation2 + $0x8] sm:$0xff]
    %v426 = vunpack.c.l.b16 %v232
    %v427 = vunpack.c.l.b16 %v233
    %v428 = vunpack.c.l.b16 %v234
    %v429 = vunpack.c.l.b16 %v235
    %v430 = vunpack.c.l.b16 %v236
    %v431 = vunpack.c.l.b16 %v237
    %v432 = vunpack.c.l.b16 %v238
    %v433 = vunpack.c.l.b16 %v239
    %v434 = vunpack.c.l.b16 %v240
    %v435 = vunpack.c.l.b16 %v241
    %v436 = vunpack.c.l.b16 %v242
    %v437 = vunpack.c.l.b16 %v243
    %v438 = vunpack.c.l.b16 %v244
    %v439 = vunpack.c.l.b16 %v245
    %v440 = vunpack.c.l.b16 %v246
    %v441 = vunpack.c.l.b16 %v247
    %v442 = vunpack.c.l.b16 %v248
    %v443 = vunpack.c.l.b16 %v249
    %v444 = vunpack.c.l.b16 %v250
    %v445 = vunpack.c.l.b16 %v251
    %v446 = vunpack.c.l.b16 %v252
    %v447 = vunpack.c.l.b16 %v253
    %v448 = vunpack.c.l.b16 %v254
    %v449 = vunpack.c.l.b16 %v255
    %v450 = vunpack.c.l.b16 %v256
    %v451 = vunpack.c.l.b16 %v257
    %v452 = vunpack.c.l.b16 %v258
    %v453 = vunpack.c.l.b16 %v259
    %v454 = vunpack.c.l.b16 %v260
    %v455 = vunpack.c.l.b16 %v261
    %v456 = vunpack.c.l.b16 %v262
    %v457 = vunpack.c.l.b16 %v263
    %v458 = vunpack.c.l.b16 %v264
    %v459 = vunpack.c.l.b16 %v265
    %v460 = vunpack.c.l.b16 %v266
    %v461 = vunpack.c.l.b16 %v267
    %v462 = vunpack.c.l.b16 %v268
    %v463 = vunpack.c.l.b16 %v269
    %v464 = vunpack.c.l.b16 %v270
    %v465 = vunpack.c.l.b16 %v271
    %v466 = vunpack.c.l.b16 %v272
    %v467 = vunpack.c.l.b16 %v273
    %v468 = vunpack.c.l.b16 %v274
    %v469 = vunpack.c.l.b16 %v275
    %v470 = vunpack.c.l.b16 %v276
    %v471 = vunpack.c.l.b16 %v277
    %v472 = vunpack.c.l.b16 %v278
    %v473 = vunpack.c.l.b16 %v279
    %v474 = vunpack.c.l.b16 %v280
    %v475 = vunpack.c.l.b16 %v281
    %v476 = vunpack.c.l.b16 %v282
    %v477 = vunpack.c.l.b16 %v283
    %v478 = vunpack.c.l.b16 %v284
    %v479 = vunpack.c.l.b16 %v285
    %v480 = vunpack.c.l.b16 %v286
    %v481 = vunpack.c.l.b16 %v287
    %v482 = vunpack.c.l.b16 %v288
    %v483 = vunpack.c.l.b16 %v289
    %v484 = vunpack.c.l.b16 %v290
    %v485 = vunpack.c.l.b16 %v291
    %v486 = vunpack.c.l.b16 %v292
    %v487 = vunpack.c.l.b16 %v293
    %v488 = vunpack.c.l.b16 %v294
    %v489 = vunpack.c.l.b16 %v295
    %v490 = vunpack.c.l.b16 %v296
    %v491 = vunpack.c.l.b16 %v297
    %v492 = vunpack.c.l.b16 %v298
    %v493 = vunpack.c.l.b16 %v299
    %v494 = vunpack.c.l.b16 %v300
    %v495 = vunpack.c.l.b16 %v301
    %v496 = vunpack.c.l.b16 %v302
    %v497 = vunpack.c.l.b16 %v303
    %v498 = vunpack.c.l.b16 %v304
    %v499 = vunpack.c.l.b16 %v305
    %v500 = vunpack.c.l.b16 %v306
    %v501 = vunpack.c.l.b16 %v307
    %v502 = vunpack.c.l.b16 %v308
    %v503 = vunpack.c.l.b16 %v309
    %v504 = vunpack.c.l.b16 %v310
    %v505 = vunpack.c.l.b16 %v311
    %v506 = vunpack.c.l.b16 %v312
    %v507 = vunpack.c.l.b16 %v313
    %v508 = vunpack.c.l.b16 %v314
    %v509 = vunpack.c.l.b16 %v315
    %v510 = vunpack.c.l.b16 %v316
    %v511 = vunpack.c.l.b16 %v317
    %v512 = vunpack.c.l.b16 %v318
    %v513 = vunpack.c.l.b16 %v319
    %v514 = vunpack.c.l.b16 %v320
    %v515 = vunpack.c.l.b16 %v321
    %v516 = vunpack.c.l.b16 %v322
    %v517 = vunpack.c.l.b16 %v323
    %v518 = vunpack.c.l.b16 %v324
    %v519 = vunpack.c.l.b16 %v325
    %v520 = vunpack.c.l.b16 %v326
    %v521 = vunpack.c.l.b16 %v327
    %v522 = vpack.c.b16 %v427, %v426
    %v523 = vpack.c.b16 %v429, %v428
    %v524 = vpack.c.b16 %v431, %v430
    %v525 = vpack.c.b16 %v433, %v432
    %v526 = vpack.c.b16 %v435, %v434
    %v527 = vpack.c.b16 %v437, %v436
    %v528 = vpack.c.b16 %v439, %v438
    %v529 = vpack.c.b16 %v441, %v440
    %v530 = vpack.c.b16 %v443, %v442
    %v531 = vpack.c.b16 %v445, %v444
    %v532 = vpack.c.b16 %v447, %v446
    %v533 = vpack.c.b16 %v449, %v448
    %v534 = vpack.c.b16 %v451, %v450
    %v535 = vpack.c.b16 %v453, %v452
    %v536 = vpack.c.b16 %v455, %v454
    %v537 = vpack.c.b16 %v457, %v456
    %v538 = vpack.c.b16 %v459, %v458
    %v539 = vpack.c.b16 %v461, %v460
    %v540 = vpack.c.b16 %v463, %v462
    %v541 = vpack.c.b16 %v465, %v464
    %v542 = vpack.c.b16 %v467, %v466
    %v543 = vpack.c.b16 %v469, %v468
    %v544 = vpack.c.b16 %v471, %v470
    %v545 = vpack.c.b16 %v473, %v472
    %v546 = vpack.c.b16 %v475, %v474
    %v547 = vpack.c.b16 %v477, %v476
    %v548 = vpack.c.b16 %v479, %v478
    %v549 = vpack.c.b16 %v481, %v480
    %v550 = vpack.c.b16 %v483, %v482
    %v551 = vpack.c.b16 %v485, %v484
    %v552 = vpack.c.b16 %v487, %v486
    %v553 = vpack.c.b16 %v489, %v488
    %v554 = vpack.c.b16 %v491, %v490
    %v555 = vpack.c.b16 %v493, %v492
    %v556 = vpack.c.b16 %v495, %v494
    %v557 = vpack.c.b16 %v497, %v496
    %v558 = vpack.c.b16 %v499, %v498
    %v559 = vpack.c.b16 %v501, %v500
    %v560 = vpack.c.b16 %v503, %v502
    %v561 = vpack.c.b16 %v505, %v504
    %v562 = vpack.c.b16 %v507, %v506
    %v563 = vpack.c.b16 %v509, %v508
    %v564 = vpack.c.b16 %v511, %v510
    %v565 = vpack.c.b16 %v513, %v512
    %v566 = vpack.c.b16 %v515, %v514
    %v567 = vpack.c.b16 %v517, %v516
    %v568 = vpack.c.b16 %v519, %v518
    %v569 = vpack.c.b16 %v521, %v520
    %618 = vmatprep.subr.bf16.mxu0 0
    %619 = vmatpush1.bf16.msra.mxu0 %v522
    %620 = vmatprep.subr.bf16.mxu0 0
    %621 = vmatpush1.bf16.msra.mxu0 %v523
    %622 = vmatprep.subr.bf16.mxu0 0
    %623 = vmatpush1.bf16.msra.mxu0 %v524
    %624 = vmatprep.subr.bf16.mxu0 0
    %625 = vmatpush1.bf16.msra.mxu0 %v525
    %626 = vmatprep.subr.bf16.mxu0 0
    %627 = vmatpush1.bf16.msra.mxu0 %v526
    %628 = vmatprep.subr.bf16.mxu0 0
    %629 = vmatpush1.bf16.msra.mxu0 %v527
    %630 = vmatprep.subr.bf16.mxu0 0
    %631 = vmatpush1.bf16.msra.mxu0 %v528
    %632 = vmatprep.subr.bf16.mxu0 0
    %633 = vmatpush1.bf16.msra.mxu0 %v529
    %634 = vmatprep.subr.bf16.mxu0 0
    %635 = vmatpush1.bf16.msra.mxu0 %v530
    %636 = vmatprep.subr.bf16.mxu0 0
    %637 = vmatpush1.bf16.msra.mxu0 %v531
    %638 = vmatprep.subr.bf16.mxu0 0
    %639 = vmatpush1.bf16.msra.mxu0 %v532
    %640 = vmatprep.subr.bf16.mxu0 0
    %641 = vmatpush1.bf16.msra.mxu0 %v533
    %642 = vmatprep.subr.bf16.mxu0 0
    %643 = vmatpush1.bf16.msra.mxu0 %v534
    %644 = vmatprep.subr.bf16.mxu0 0
    %645 = vmatpush1.bf16.msra.mxu0 %v535
    %646 = vmatprep.subr.bf16.mxu0 0
    %647 = vmatpush1.bf16.msra.mxu0 %v536
    %648 = vmatprep.subr.bf16.mxu0 0
    %649 = vmatpush1.bf16.msra.mxu0 %v537
    %650 = vmatprep.mubr.bf16.mxu0 %v222
    %651 = vmatmul.mubr.bf16.gmra.mrb[0].mxu0 %v221
    %v652 = vpop.f32.mrb[0].mxu0
    %v653 = vadd.f32 0.0, %v652
    %v654 = vpop.f32.mrb[0].mxu0
    %v655 = vpop.f32.mrb[0].mxu0
    %v656 = vadd.f32 0.0, %v655
    %v657 = vpop.f32.mrb[0].mxu0
    %658 = vdwg.mxu0
    %659 = vmatprep.subr.bf16.mxu0 0
    %660 = vmatpush1.bf16.msra.mxu0 %v538
    %661 = vmatprep.subr.bf16.mxu0 0
    %662 = vmatpush1.bf16.msra.mxu0 %v539
    %663 = vmatprep.subr.bf16.mxu0 0
    %664 = vmatpush1.bf16.msra.mxu0 %v540
    %665 = vmatprep.subr.bf16.mxu0 0
    %666 = vmatpush1.bf16.msra.mxu0 %v541
    %667 = vmatprep.subr.bf16.mxu0 0
    %668 = vmatpush1.bf16.msra.mxu0 %v542
    %669 = vmatprep.subr.bf16.mxu0 0
    %670 = vmatpush1.bf16.msra.mxu0 %v543
    %671 = vmatprep.subr.bf16.mxu0 0
    %672 = vmatpush1.bf16.msra.mxu0 %v544
    %673 = vmatprep.subr.bf16.mxu0 0
    %674 = vmatpush1.bf16.msra.mxu0 %v545
    %675 = vmatprep.subr.bf16.mxu0 0
    %676 = vmatpush1.bf16.msra.mxu0 %v546
    %677 = vmatprep.subr.bf16.mxu0 0
    %678 = vmatpush1.bf16.msra.mxu0 %v547
    %679 = vmatprep.subr.bf16.mxu0 0
    %680 = vmatpush1.bf16.msra.mxu0 %v548
    %681 = vmatprep.subr.bf16.mxu0 0
    %682 = vmatpush1.bf16.msra.mxu0 %v549
    %683 = vmatprep.subr.bf16.mxu0 0
    %684 = vmatpush1.bf16.msra.mxu0 %v550
    %685 = vmatprep.subr.bf16.mxu0 0
    %686 = vmatpush1.bf16.msra.mxu0 %v551
    %687 = vmatprep.subr.bf16.mxu0 0
    %688 = vmatpush1.bf16.msra.mxu0 %v552
    %689 = vmatprep.subr.bf16.mxu0 0
    %690 = vmatpush1.bf16.msra.mxu0 %v553
    %691 = vmatprep.mubr.bf16.mxu0 %v224
    %692 = vmatmul.mubr.bf16.gmra.mrb[0].mxu0 %v223
    %v693 = vpop.f32.mrb[0].mxu0
    %v694 = vadd.f32 %v653, %v693
    %v695 = vpop.f32.mrb[0].mxu0
    %v696 = vpop.f32.mrb[0].mxu0
    %v697 = vadd.f32 %v656, %v696
    %v698 = vpop.f32.mrb[0].mxu0
    %699 = vdwg.mxu0
    %700 = vmatprep.subr.bf16.mxu0 0
    %701 = vmatpush1.bf16.msra.mxu0 %v554
    %702 = vmatprep.subr.bf16.mxu0 0
    %703 = vmatpush1.bf16.msra.mxu0 %v555
    %704 = vmatprep.subr.bf16.mxu0 0
    %705 = vmatpush1.bf16.msra.mxu0 %v556
    %706 = vmatprep.subr.bf16.mxu0 0
    %707 = vmatpush1.bf16.msra.mxu0 %v557
    %708 = vmatprep.subr.bf16.mxu0 0
    %709 = vmatpush1.bf16.msra.mxu0 %v558
    %710 = vmatprep.subr.bf16.mxu0 0
    %711 = vmatpush1.bf16.msra.mxu0 %v559
    %712 = vmatprep.subr.bf16.mxu0 0
    %713 = vmatpush1.bf16.msra.mxu0 %v560
    %714 = vmatprep.subr.bf16.mxu0 0
    %715 = vmatpush1.bf16.msra.mxu0 %v561
    %716 = vmatprep.subr.bf16.mxu0 0
    %717 = vmatpush1.bf16.msra.mxu0 %v562
    %718 = vmatprep.subr.bf16.mxu0 0
    %719 = vmatpush1.bf16.msra.mxu0 %v563
    %720 = vmatprep.subr.bf16.mxu0 0
    %721 = vmatpush1.bf16.msra.mxu0 %v564
    %722 = vmatprep.subr.bf16.mxu0 0
    %723 = vmatpush1.bf16.msra.mxu0 %v565
    %724 = vmatprep.subr.bf16.mxu0 0
    %725 = vmatpush1.bf16.msra.mxu0 %v566
    %726 = vmatprep.subr.bf16.mxu0 0
    %727 = vmatpush1.bf16.msra.mxu0 %v567
    %728 = vmatprep.subr.bf16.mxu0 0
    %729 = vmatpush1.bf16.msra.mxu0 %v568
    %730 = vmatprep.subr.bf16.mxu0 0
    %731 = vmatpush1.bf16.msra.mxu0 %v569
    %732 = vmatprep.mubr.bf16.mxu0 %v226
    %733 = vmatmul.mubr.bf16.gmra.mrb[0].mxu0 %v225
    %v734 = vpop.f32.mrb[0].mxu0
    %v735 = vadd.f32 %v694, %v734
    %v736 = vpop.f32.mrb[0].mxu0
    %v737 = vpop.f32.mrb[0].mxu0
    %v738 = vadd.f32 %v697, %v737
    %v739 = vpop.f32.mrb[0].mxu0
    %740 = vdwg.mxu0
    %v741 = vadd.f32 %v328, %v735
    %v742 = vadd.f32 %v329, %v738
    %743 = vst [vmem:[#allocation2] sm:$0xff] %v741
    %744 = vst [vmem:[#allocation2 + $0x8] sm:$0xff] %v742
    // Predicated region
    $region38: #{tpu_custom_call.1} parent=1 // pred_check
      %p745 = pneg %p63
    $region39: #{tpu_custom_call.1} parent=1 // pred_check_branch
      %747 = sbr.rel (%p745) target = $region41
    $region40: #{tpu_custom_call.1} parent=1 // pred_region
      %v748 = vld [vmem:[#allocation2] sm:$0xff]
      %v749 = vld [vmem:[#allocation2 + $0x8] sm:$0xff]
      %v750 = vld [vmem:[%s2] sm:$0x1]
      %v752 = vlaneseq
      %v753 = vshrl.u32 %v752, 7
      %v754 = vsub.s32 0, %v753
      %v755 = vrot.slane %v750, %v754
      %v757 = vadd.f32 %v748, %v755
      %v758 = vadd.f32 %v749, %v755
      %v759 = vmax.f32 %v757, 0.0
      %v760 = vmax.f32 %v758, 0.0
      %v761 = vpack.c.bf16 %v760, %v759
      %v762 = vld [vmem:[#allocation8] sm:$0xf]
      %v763 = vld [vmem:[#allocation8 + $0x4] sm:$0xf]
      %v764 = vld [vmem:[#allocation8 + $0x8] sm:$0xf]
      %v765 = vld [vmem:[#allocation8 + $0xc] sm:$0xf]
      %v766 = vld [vmem:[#allocation8 + $0x10] sm:$0xf]
      %v767 = vld [vmem:[#allocation8 + $0x14] sm:$0xf]
      %v768 = vld [vmem:[#allocation8 + $0x18] sm:$0xf]
      %v769 = vld [vmem:[#allocation8 + $0x1c] sm:$0xf]
      %v770 = vld [vmem:[#allocation8 + $0x20] sm:$0xf]
      %v771 = vld [vmem:[#allocation8 + $0x24] sm:$0xf]
      %v772 = vld [vmem:[#allocation8 + $0x28] sm:$0xf]
      %v773 = vld [vmem:[#allocation8 + $0x2c] sm:$0xf]
      %v774 = vld [vmem:[#allocation8 + $0x30] sm:$0xf]
      %v775 = vld [vmem:[#allocation8 + $0x34] sm:$0xf]
      %v776 = vld [vmem:[#allocation8 + $0x38] sm:$0xf]
      %v777 = vld [vmem:[#allocation8 + $0x3c] sm:$0xf]
      %v778 = vld [vmem:[%s4] sm:$0x1]
      %v780 = vlaneseq
      %v781 = vshrl.u32 %v780, 7
      %v782 = vsub.s32 0, %v781
      %v783 = vrot.slane %v778, %v782
      %v801 = vunpack.c.l.b16 %v762
      %v802 = vunpack.c.l.b16 %v763
      %v803 = vunpack.c.l.b16 %v764
      %v804 = vunpack.c.l.b16 %v765
      %v805 = vunpack.c.l.b16 %v766
      %v806 = vunpack.c.l.b16 %v767
      %v807 = vunpack.c.l.b16 %v768
      %v808 = vunpack.c.l.b16 %v769
      %v809 = vunpack.c.l.b16 %v770
      %v810 = vunpack.c.l.b16 %v771
      %v811 = vunpack.c.l.b16 %v772
      %v812 = vunpack.c.l.b16 %v773
      %v813 = vunpack.c.l.b16 %v774
      %v814 = vunpack.c.l.b16 %v775
      %v815 = vunpack.c.l.b16 %v776
      %v816 = vunpack.c.l.b16 %v777
      %v817 = vpack.c.b16 %v802, %v801
      %v818 = vpack.c.b16 %v804, %v803
      %v819 = vpack.c.b16 %v806, %v805
      %v820 = vpack.c.b16 %v808, %v807
      %v821 = vpack.c.b16 %v810, %v809
      %v822 = vpack.c.b16 %v812, %v811
      %v823 = vpack.c.b16 %v814, %v813
      %v824 = vpack.c.b16 %v816, %v815
      %833 = vmatprep.subr.bf16.mxu0 0
      %834 = vmatpush1.bf16.msra.mxu0 %v817
      %835 = vmatprep.subr.bf16.mxu0 0
      %836 = vmatpush1.bf16.msra.mxu0 %v818
      %837 = vmatprep.subr.bf16.mxu0 0
      %838 = vmatpush1.bf16.msra.mxu0 %v819
      %839 = vmatprep.subr.bf16.mxu0 0
      %840 = vmatpush1.bf16.msra.mxu0 %v820
      %841 = vmatprep.subr.bf16.mxu0 0
      %842 = vmatpush1.bf16.msra.mxu0 %v821
      %843 = vmatprep.subr.bf16.mxu0 0
      %844 = vmatpush1.bf16.msra.mxu0 %v822
      %845 = vmatprep.subr.bf16.mxu0 0
      %846 = vmatpush1.bf16.msra.mxu0 %v823
      %847 = vmatprep.subr.bf16.mxu0 0
      %848 = vmatpush1.bf16.msra.mxu0 %v824
      %849 = vmatprep.subr.bf16.mxu0 0
      %850 = vmatpush1.bf16.msra.mxu0 0
      %851 = vmatprep.subr.bf16.mxu0 0
      %852 = vmatpush1.bf16.msra.mxu0 0
      %853 = vmatprep.subr.bf16.mxu0 0
      %854 = vmatpush1.bf16.msra.mxu0 0
      %855 = vmatprep.subr.bf16.mxu0 0
      %856 = vmatpush1.bf16.msra.mxu0 0
      %857 = vmatprep.subr.bf16.mxu0 0
      %858 = vmatpush1.bf16.msra.mxu0 0
      %859 = vmatprep.subr.bf16.mxu0 0
      %860 = vmatpush1.bf16.msra.mxu0 0
      %861 = vmatprep.subr.bf16.mxu0 0
      %862 = vmatpush1.bf16.msra.mxu0 0
      %863 = vmatprep.subr.bf16.mxu0 0
      %864 = vmatpush1.bf16.msra.mxu0 0
      %865 = vmatprep.mubr.bf16.mxu0 0
      %866 = vmatmul.mubr.bf16.gmra.mrb[0].mxu0 %v761
      %v867 = vpop.f32.mrb[0].mxu0
      %v868 = vadd.f32 %v783, %v867
      %v869 = vpop.f32.mrb[0].mxu0
      %v870 = vpop.f32.mrb[0].mxu0
      %v871 = vadd.f32 %v783, %v870
      %v872 = vpop.f32.mrb[0].mxu0
      %873 = vdwg.mxu0
      %874 = vst [vmem:[#allocation9] sm:$0xff] %v868
      %875 = vst [vmem:[#allocation9 + $0x8] sm:$0xff] %v871
    $region41: #{tpu_custom_call.1} parent=1 // pred_fallthru
      _
    // Predicated region
    $region42: #{tpu_custom_call.1} parent=1 // pred_check
      _
    $region43: #{tpu_custom_call.1} parent=1 // pred_check_branch
      %877 = sbr.rel (0) target = $region45
    $region44: #{tpu_custom_call.1} parent=1 // pred_region
      %s879 = ssub.s32 256, 256
      %880 = vsyncadd [#allocation5], %s879
      %s881 = sshll.u32 [#allocation9], 4
      %s882 = int_to_ptr.vmem [resolvable:$true] %s881
      %887 = dma.vmem_to_hbm [thread:$0]  %s882, 256, %s5, [#allocation5], 128, 128, 8
    $region45: #{tpu_custom_call.1} parent=1 // pred_fallthru
      _
    // Predicated region
    $region46: #{tpu_custom_call.1} parent=1 // pred_check
      _
    $region47: #{tpu_custom_call.1} parent=1 // pred_check_branch
      %889 = sbr.rel (0) target = $region49
    $region48: #{tpu_custom_call.1} parent=1 // pred_region
      %890 = dma.done [#allocation5], 256
    $region49: #{tpu_custom_call.1} parent=1 // pred_fallthru
      _
    %891 = vsyncpa [#allocation4], 1
    %892 = vsyncpa [#allocation7], 1
    %893 = vsyncpa [#allocation5], 1

</llo_original>
